<compile_context>
chip_gen: v7x
topology: tpu7x:2x2x1
jax: 0.10.0
libtpu: 0.0.40
codegen_flags: <defaults>
</compile_context>

<pallas_src>
import jax
import jax.numpy as jnp
from jax.experimental import pallas as pl
from jax.experimental.pallas import tpu as pltpu


def _round_up(n, m):
    return ((n + m - 1) // m) * m


def grui_kernel(belta_ref, x_ref, state_ref,
                ws12_ref, wx123_ref, w3s_ref,
                b12_ref, b3_ref,
                out_ref):
    Hp = b3_ref.shape[-1]
    w_dtype = ws12_ref.dtype              # bf16 in production, f32 for checks

    belta = belta_ref[...]
    state = belta * state_ref[...]        # state = belta * state   (f32)
    x = x_ref[...]

    # Fused MXU matmuls (narrow operands, f32 accumulation):
    #   one over x for all three gates, one over state for the u/r gates.
    xg = jnp.dot(x.astype(w_dtype), wx123_ref[...],
                 preferred_element_type=jnp.float32)        # (bm, 3Hp)
    sg = jnp.dot(state.astype(w_dtype), ws12_ref[...],
                 preferred_element_type=jnp.float32)        # (bm, 2Hp)
    gates = sg + xg[:, :2 * Hp] + b12_ref[...]

    u = jax.nn.sigmoid(gates[:, :Hp])     # u_t = sigmoid(fc1([state, x]))
    r = jax.nn.sigmoid(gates[:, Hp:])     # r_t = sigmoid(fc2([state, x]))

    # new_state = tanh(fc3([r * state, x]))
    new = jnp.tanh(
        jnp.dot((r * state).astype(w_dtype), w3s_ref[...],
                preferred_element_type=jnp.float32)
        + xg[:, 2 * Hp:] + b3_ref[...])

    # (1 - u) * state + u * new  ==  state + u * (new - state)
    out_ref[...] = state + u * (new - state)


def pack_params(params, input_size, h_dim, weight_dtype=jnp.bfloat16):
    """Pad + fuse the gate weights and cast them to `weight_dtype`.

    Lane-dense (128-multiple) padding only pays off once H/F are MXU-sized;
    small dims are rounded only to the 8-sublane granule and used as
    full-array block dims. Biases stay f32 (elementwise math stays f32).
    """
    Hp = _round_up(h_dim, 128 if h_dim >= 128 else 8)
    Fp = _round_up(input_size, 128 if input_size >= 128 else 8)

    def pad2(a, rows, cols):
        return jnp.pad(a, ((0, rows - a.shape[0]), (0, cols - a.shape[1])))

    ws12 = jnp.concatenate(
        [pad2(params["w1s"], Hp, Hp), pad2(params["w2s"], Hp, Hp)], axis=1)
    wx123 = jnp.concatenate(
        [pad2(params["w1x"], Fp, Hp), pad2(params["w2x"], Fp, Hp),
         pad2(params["w3x"], Fp, Hp)], axis=1)
    w3s = pad2(params["w3s"], Hp, Hp)
    b12 = jnp.concatenate(
        [pad2(params["b1"], 1, Hp), pad2(params["b2"], 1, Hp)], axis=1)
    b3 = pad2(params["b3"], 1, Hp)
    return {"ws12": ws12.astype(weight_dtype),
            "wx123": wx123.astype(weight_dtype),
            "w3s": w3s.astype(weight_dtype),
            "b12": b12, "b3": b3,            # biases stay f32
            "Hp": Hp, "Fp": Fp}


def _pick_batch_tile(B):
    """(bm, B_pad): >=2 batch tiles once B > 64 (v7x megacore gets both TCs
    busy), tile size capped near 512 rows (amortizes the ~0.35us per-step
    overhead and fills the MXU on single-TC v5e/v6e)."""
    B8 = _round_up(B, 8)
    if B8 <= 64:
        return B8, B8
    tiles = max(2, -(-B8 // 512))
    bm = _round_up(-(-B8 // tiles), 8)
    return bm, bm * tiles


def grui_forward(belta, x, state, packed):
    """One GRUI step.  belta:(B,H)  x:(B,F)  state:(B,H) -> (B,H)."""
    B, H = belta.shape
    F = x.shape[1]
    Hp, Fp = packed["Hp"], packed["Fp"]

    bm, B_pad = _pick_batch_tile(B)

    def pad_act(a, cols):
        return jnp.pad(a, ((0, B_pad - a.shape[0]), (0, cols - a.shape[1])))

    # Activations stay f32 in HBM (module interface is f32).  For very large B
    # a bf16 I/O variant would halve activation DMA bytes.
    belta_p = pad_act(belta, Hp)
    state_p = pad_act(state, Hp)
    x_p = pad_act(x, Fp)

    grid = (B_pad // bm,)
    act_spec_h = pl.BlockSpec((bm, Hp), lambda i: (i, 0))
    act_spec_f = pl.BlockSpec((bm, Fp), lambda i: (i, 0))
    out_spec = pl.BlockSpec((bm, Hp), lambda i: (i, 0))

    # Weights/biases: full block, constant index_map -> resident across tiles.
    w_shapes = ((Hp, 2 * Hp), (Fp, 3 * Hp), (Hp, Hp), (1, 2 * Hp), (1, Hp))
    w_args = (packed["ws12"], packed["wx123"], packed["w3s"],
              packed["b12"], packed["b3"])
    weight_bytes = sum(int(w.size) * w.dtype.itemsize for w in w_args)

    def run(weight_pipeline_mode, weight_buffers):
        def w_spec(shape):
            if weight_pipeline_mode is None:
                return pl.BlockSpec(shape, lambda i: (0, 0))
            return pl.BlockSpec(shape, lambda i: (0, 0),
                                pipeline_mode=weight_pipeline_mode)

        w_specs = [w_spec(s) for s in w_shapes]

        # Explicit VMEM budget: resident weights + double-buffered activation
        # tiles + intermediates headroom.
        est = (weight_bytes * weight_buffers
               + 2 * 4 * bm * (2 * Hp + Fp)      # belta/state/x, double-buffered
               + 2 * 4 * bm * Hp                 # output, double-buffered
               + 4 * bm * 10 * Hp)               # in-kernel intermediates headroom
        ckw = dict(dimension_semantics=("parallel",))
        if est > 12 * 1024 * 1024:
            # Defaults are 16 MiB (v5e) / 32 MiB (v6e, v7x) scoped VMEM.  Never
            # bid below 32 MiB; cap at 56 MiB to stay inside v7x's 64 MiB VMEM.
            # TODO(synk): if bf16 wx123 alone approaches ~48 MiB (huge H*F),
            # add an inner 'arbitrary' K grid axis + f32 accumulator scratch
            # instead of keeping the full fused weight resident.
            ckw["vmem_limit_bytes"] = int(min(max(est * 5 // 4, 32 * 1024 * 1024),
                                              56 * 1024 * 1024))

        return pl.pallas_call(
            grui_kernel,
            out_shape=jax.ShapeDtypeStruct((B_pad, Hp), jnp.float32),
            grid=grid,
            in_specs=[act_spec_h, act_spec_f, act_spec_h] + w_specs,
            out_specs=out_spec,
            compiler_params=pltpu.CompilerParams(**ckw),
        )(belta_p, x_p, state_p, *w_args)

    # Single-buffer the resident weights only on the 128-padded (H >= 128)
    # path, where it actually matters for VMEM; fall back to the default
    # double-buffering if this jax build doesn't support Buffered(1) here.
    if Hp >= 128:
        try:
            out = run(pl.Buffered(1), 1)
        except Exception:   # pragma: no cover - fallback for older jax builds
            out = run(None, 2)
    else:
        out = run(None, 2)

    return out[:B, :H]


def init_params(key, input_size, h_dim):
    """Deterministic init matching torch.nn.Linear default (uniform +-1/sqrt(fan_in)).

    Weights are stored TRANSPOSED relative to torch.nn.Linear, i.e. (in, out),
    split into 'state' (H, H) and 'x' (F, H) parts so the torch
    cat([state, x]) @ W.T becomes state @ Ws + x @ Wx.
    """
    fan_in = input_size + h_dim
    bound = 1.0 / (fan_in ** 0.5)
    keys = jax.random.split(key, 6)
    params = {}
    for i, name in enumerate(("1", "2", "3")):
        w = jax.random.uniform(keys[2 * i], (fan_in, h_dim),
                               minval=-bound, maxval=bound, dtype=jnp.float32)
        b = jax.random.uniform(keys[2 * i + 1], (1, h_dim),
                               minval=-bound, maxval=bound, dtype=jnp.float32)
        params["w" + name + "s"] = w[:h_dim]          # multiplies state
        params["w" + name + "x"] = w[h_dim:]          # multiplies x
        params["b" + name] = b
    return params


def grui_reference(belta, x, state, params):
    """Pure-JAX reference mirroring the PyTorch forward (f32)."""
    state = belta * state
    sx = jnp.concatenate([state, x], axis=-1)
    w1 = jnp.concatenate([params["w1s"], params["w1x"]], axis=0)
    w2 = jnp.concatenate([params["w2s"], params["w2x"]], axis=0)
    w3 = jnp.concatenate([params["w3s"], params["w3x"]], axis=0)
    u = jax.nn.sigmoid(sx @ w1 + params["b1"])
    r = jax.nn.sigmoid(sx @ w2 + params["b2"])
    rsx = jnp.concatenate([r * state, x], axis=-1)
    new = jnp.tanh(rsx @ w3 + params["b3"])
    return (1.0 - u) * state + u * new


if __name__ == "__main__":
    # ---- spec-sized case: B=2, input_size=16 (N*F), h_dim=32 -------------
    B, F, H = 2, 16, 32
    key = jax.random.PRNGKey(0)
    k_belta, k_x, k_state, k_params = jax.random.split(key, 4)

    belta = jax.random.uniform(k_belta, (B, H), dtype=jnp.float32)   # time decay
    x = jax.random.normal(k_x, (B, F), dtype=jnp.float32)            # input
    state = jax.random.normal(k_state, (B, H), dtype=jnp.float32)    # prev state

    params = init_params(k_params, F, H)
    ref = grui_reference(belta, x, state, params)

    # 1) logic check: f32 weights, tight tolerance.
    packed_f32 = pack_params(params, F, H, weight_dtype=jnp.float32)
    out_f32 = jax.block_until_ready(grui_forward(belta, x, state, packed_f32))
    assert out_f32.shape == (B, H)
    assert jnp.allclose(out_f32, ref, atol=1e-5, rtol=1e-5)

    # 2) production path: bf16 weights on the MXU, looser tolerance.
    packed_bf16 = pack_params(params, F, H)
    out_bf16 = jax.block_until_ready(grui_forward(belta, x, state, packed_bf16))
    assert jnp.allclose(out_bf16, ref, atol=5e-2, rtol=5e-2)

    # 3) state=None path (state defaults to zeros_like(belta)).
    out0 = jax.block_until_ready(
        grui_forward(belta, x, jnp.zeros_like(belta), packed_f32))
    ref0 = grui_reference(belta, x, jnp.zeros_like(belta), params)
    assert jnp.allclose(out0, ref0, atol=1e-5, rtol=1e-5)

    # 4) medium case: exercises the 128-lane padded path, single-buffered
    #    resident weights and a >=2-tile batch grid (v7x megacore).
    B2, F2, H2 = 200, 100, 136
    k2 = jax.random.split(jax.random.PRNGKey(1), 4)
    belta2 = jax.random.uniform(k2[0], (B2, H2), dtype=jnp.float32)
    x2 = jax.random.normal(k2[1], (B2, F2), dtype=jnp.float32)
    state2 = jax.random.normal(k2[2], (B2, H2), dtype=jnp.float32)
    params2 = init_params(k2[3], F2, H2)
    packed2 = pack_params(params2, F2, H2)
    out2 = jax.block_until_ready(grui_forward(belta2, x2, state2, packed2))
    ref2 = grui_reference(belta2, x2, state2, params2)
    assert out2.shape == (B2, H2)
    assert jnp.allclose(out2, ref2, atol=5e-2, rtol=5e-2)

    print("KERNEL_OK")
</pallas_src>

<mosaic_0001>
module attributes {stable_mosaic.version = 11 : i64} {
  func.func @grui_kernel(%arg0: i32, %arg1: memref<8x32xf32, #tpu.memory_space<vmem>>, %arg2: memref<8x16xf32, #tpu.memory_space<vmem>>, %arg3: memref<8x32xf32, #tpu.memory_space<vmem>>, %arg4: memref<32x64xf32, #tpu.memory_space<vmem>>, %arg5: memref<16x96xf32, #tpu.memory_space<vmem>>, %arg6: memref<32x32xf32, #tpu.memory_space<vmem>>, %arg7: memref<1x64xf32, #tpu.memory_space<vmem>>, %arg8: memref<1x32xf32, #tpu.memory_space<vmem>>, %arg9: memref<8x32xf32, #tpu.memory_space<vmem>>) attributes {dimension_semantics = [#tpu.dimension_semantics<parallel>], iteration_bounds = array<i64: 1>, scalar_prefetch = 0 : i64, scratch_operands = 0 : i64, tpu.core_type = #tpu.core_type<tc>, window_params = [{transform_indices = @transform_0, window_bounds = array<i64: 8, 32>}, {transform_indices = @transform_1, window_bounds = array<i64: 8, 16>}, {transform_indices = @transform_2, window_bounds = array<i64: 8, 32>}, {pipeline_mode = #tpu.pipeline_mode<synchronous>, transform_indices = @transform_3, window_bounds = array<i64: 32, 64>}, {pipeline_mode = #tpu.pipeline_mode<synchronous>, transform_indices = @transform_4, window_bounds = array<i64: 16, 96>}, {pipeline_mode = #tpu.pipeline_mode<synchronous>, transform_indices = @transform_5, window_bounds = array<i64: 32, 32>}, {pipeline_mode = #tpu.pipeline_mode<synchronous>, transform_indices = @transform_6, window_bounds = array<i64: 1, 64>}, {pipeline_mode = #tpu.pipeline_mode<synchronous>, transform_indices = @transform_7, window_bounds = array<i64: 1, 32>}, {transform_indices = @transform_8, window_bounds = array<i64: 8, 32>}]} {
    %c0 = arith.constant 0 : index
    %c0_0 = arith.constant 0 : index
    %0 = vector.load %arg1[%c0, %c0_0] : memref<8x32xf32, #tpu.memory_space<vmem>>, vector<8x32xf32>
    %c0_1 = arith.constant 0 : index
    %c0_2 = arith.constant 0 : index
    %1 = vector.load %arg3[%c0_1, %c0_2] : memref<8x32xf32, #tpu.memory_space<vmem>>, vector<8x32xf32>
    %2 = arith.mulf %0, %1 : vector<8x32xf32>
    %c0_3 = arith.constant 0 : index
    %c0_4 = arith.constant 0 : index
    %3 = vector.load %arg2[%c0_3, %c0_4] : memref<8x16xf32, #tpu.memory_space<vmem>>, vector<8x16xf32>
    %c0_5 = arith.constant 0 : index
    %c0_6 = arith.constant 0 : index
    %4 = vector.load %arg5[%c0_5, %c0_6] : memref<16x96xf32, #tpu.memory_space<vmem>>, vector<16x96xf32>
    %cst = arith.constant dense<0.000000e+00> : vector<8x96xf32>
    %5 = tpu.matmul %3, %4, %cst {dimension_numbers = #tpu.dot_dimension_numbers<[1], [0], [0], [1], [0, 0, 1, 1], [], []>} : vector<8x16xf32>, vector<16x96xf32>, vector<8x96xf32> -> vector<8x96xf32>
    %c0_7 = arith.constant 0 : index
    %c0_8 = arith.constant 0 : index
    %6 = vector.load %arg4[%c0_7, %c0_8] : memref<32x64xf32, #tpu.memory_space<vmem>>, vector<32x64xf32>
    %cst_9 = arith.constant dense<0.000000e+00> : vector<8x64xf32>
    %7 = tpu.matmul %2, %6, %cst_9 {dimension_numbers = #tpu.dot_dimension_numbers<[1], [0], [0], [1], [0, 0, 1, 1], [], []>} : vector<8x32xf32>, vector<32x64xf32>, vector<8x64xf32> -> vector<8x64xf32>
    %8 = vector.extract_strided_slice %5 {offsets = [0, 0], sizes = [8, 64], strides = [1, 1]} : vector<8x96xf32> to vector<8x64xf32>
    %9 = arith.addf %7, %8 : vector<8x64xf32>
    %c0_10 = arith.constant 0 : index
    %c0_11 = arith.constant 0 : index
    %10 = vector.load %arg7[%c0_10, %c0_11] : memref<1x64xf32, #tpu.memory_space<vmem>>, vector<1x64xf32>
    %11 = vector.broadcast %10 : vector<1x64xf32> to vector<8x64xf32>
    %12 = arith.addf %9, %11 : vector<8x64xf32>
    %13 = vector.extract_strided_slice %12 {offsets = [0, 0], sizes = [8, 32], strides = [1, 1]} : vector<8x64xf32> to vector<8x32xf32>
    %14 = arith.negf %13 : vector<8x32xf32>
    %15 = math.exp %14 : vector<8x32xf32>
    %cst_12 = arith.constant 1.000000e+00 : f32
    %16 = vector.broadcast %cst_12 : f32 to vector<8x32xf32>
    %17 = arith.addf %16, %15 : vector<8x32xf32>
    %18 = arith.divf %16, %17 : vector<8x32xf32>
    %19 = vector.extract_strided_slice %12 {offsets = [0, 32], sizes = [8, 32], strides = [1, 1]} : vector<8x64xf32> to vector<8x32xf32>
    %20 = arith.negf %19 : vector<8x32xf32>
    %21 = math.exp %20 : vector<8x32xf32>
    %cst_13 = arith.constant 1.000000e+00 : f32
    %22 = vector.broadcast %cst_13 : f32 to vector<8x32xf32>
    %23 = arith.addf %22, %21 : vector<8x32xf32>
    %24 = arith.divf %22, %23 : vector<8x32xf32>
    %25 = arith.mulf %24, %2 : vector<8x32xf32>
    %c0_14 = arith.constant 0 : index
    %c0_15 = arith.constant 0 : index
    %26 = vector.load %arg6[%c0_14, %c0_15] : memref<32x32xf32, #tpu.memory_space<vmem>>, vector<32x32xf32>
    %cst_16 = arith.constant dense<0.000000e+00> : vector<8x32xf32>
    %27 = tpu.matmul %25, %26, %cst_16 {dimension_numbers = #tpu.dot_dimension_numbers<[1], [0], [0], [1], [0, 0, 1, 1], [], []>} : vector<8x32xf32>, vector<32x32xf32>, vector<8x32xf32> -> vector<8x32xf32>
    %28 = vector.extract_strided_slice %5 {offsets = [0, 64], sizes = [8, 32], strides = [1, 1]} : vector<8x96xf32> to vector<8x32xf32>
    %29 = arith.addf %27, %28 : vector<8x32xf32>
    %c0_17 = arith.constant 0 : index
    %c0_18 = arith.constant 0 : index
    %30 = vector.load %arg8[%c0_17, %c0_18] : memref<1x32xf32, #tpu.memory_space<vmem>>, vector<1x32xf32>
    %31 = vector.broadcast %30 : vector<1x32xf32> to vector<8x32xf32>
    %32 = arith.addf %29, %31 : vector<8x32xf32>
    %33 = math.tanh %32 : vector<8x32xf32>
    %34 = arith.subf %33, %2 : vector<8x32xf32>
    %35 = arith.mulf %18, %34 : vector<8x32xf32>
    %36 = arith.addf %2, %35 : vector<8x32xf32>
    %c0_19 = arith.constant 0 : index
    %c0_20 = arith.constant 0 : index
    %37 = vector.load %arg9[%c0_19, %c0_20] : memref<8x32xf32, #tpu.memory_space<vmem>>, vector<8x32xf32>
    tpu.vector_store %arg9[%c0_19, %c0_20], %36 {strides = array<i32>} : memref<8x32xf32, #tpu.memory_space<vmem>>, vector<8x32xf32>,
    return
  }
  func.func @transform_0(%arg0: i32) -> (i32, i32) {
    %c0_i32 = arith.constant 0 : i32
    %c0_i32_0 = arith.constant 0 : i32
    return %arg0, %c0_i32 : i32, i32
  }
  func.func @transform_1(%arg0: i32) -> (i32, i32) {
    %c0_i32 = arith.constant 0 : i32
    %c0_i32_0 = arith.constant 0 : i32
    return %arg0, %c0_i32 : i32, i32
  }
  func.func @transform_2(%arg0: i32) -> (i32, i32) {
    %c0_i32 = arith.constant 0 : i32
    %c0_i32_0 = arith.constant 0 : i32
    return %arg0, %c0_i32 : i32, i32
  }
  func.func @transform_3(%arg0: i32) -> (i32, i32) {
    %c0_i32 = arith.constant 0 : i32
    %c0_i32_0 = arith.constant 0 : i32
    %c0_i32_1 = arith.constant 0 : i32
    return %c0_i32, %c0_i32_0 : i32, i32
  }
  func.func @transform_4(%arg0: i32) -> (i32, i32) {
    %c0_i32 = arith.constant 0 : i32
    %c0_i32_0 = arith.constant 0 : i32
    %c0_i32_1 = arith.constant 0 : i32
    return %c0_i32, %c0_i32_0 : i32, i32
  }
  func.func @transform_5(%arg0: i32) -> (i32, i32) {
    %c0_i32 = arith.constant 0 : i32
    %c0_i32_0 = arith.constant 0 : i32
    %c0_i32_1 = arith.constant 0 : i32
    return %c0_i32, %c0_i32_0 : i32, i32
  }
  func.func @transform_6(%arg0: i32) -> (i32, i32) {
    %c0_i32 = arith.constant 0 : i32
    %c0_i32_0 = arith.constant 0 : i32
    %c0_i32_1 = arith.constant 0 : i32
    return %c0_i32, %c0_i32_0 : i32, i32
  }
  func.func @transform_7(%arg0: i32) -> (i32, i32) {
    %c0_i32 = arith.constant 0 : i32
    %c0_i32_0 = arith.constant 0 : i32
    %c0_i32_1 = arith.constant 0 : i32
    return %c0_i32, %c0_i32_0 : i32, i32
  }
  func.func @transform_8(%arg0: i32) -> (i32, i32) {
    %c0_i32 = arith.constant 0 : i32
    %c0_i32_0 = arith.constant 0 : i32
    return %arg0, %c0_i32 : i32, i32
  }
}

</mosaic_0001>

<llo_original>
// kernel: tpu_custom_call.1
$region0: #{tpu_custom_call.1}
  #allocation0 [shape = 'u32[]', space=smem, size = 0x4, offset = 0x4, fixed_abs, tag = 'smem constant byte address 0x4 - core index']
  #allocation1 [shape = 'u32[144,128]{1,0:T(1,128)}', space=vmem, size = 0x12000, scoped, tag = 'internal scratch']
  %s0 = inlined_call_operand.hbm [shape: f32[8,32], index: 0, kind: input, shape index: {}]
  %s1 = inlined_call_operand.hbm [shape: f32[8,16], index: 1, kind: input, shape index: {}]
  %s2 = inlined_call_operand.hbm [shape: f32[8,32], index: 2, kind: input, shape index: {}]
  %s3 = inlined_call_operand.hbm [shape: f32[32,64], index: 3, kind: input, shape index: {}]
  %s4 = inlined_call_operand.hbm [shape: f32[16,96], index: 4, kind: input, shape index: {}]
  %s5 = inlined_call_operand.hbm [shape: f32[32,32], index: 5, kind: input, shape index: {}]
  %s6 = inlined_call_operand.vmem [shape: f32[1,64], index: 6, kind: input, shape index: {}]
  %s7 = inlined_call_operand.vmem [shape: f32[1,32], index: 7, kind: input, shape index: {}]
  %s8 = inlined_call_operand.hbm [shape: f32[8,32], index: 8, kind: output, shape index: {}]
  %s9 = sld [smem:[#allocation0]]
  $region66: #{tpu_custom_call.1} parent=0
    _
  %s11 = ssub.s32 1, %s9
  %s12 = scalar_select 0, %s11, %s9
  $region1: #{tpu_custom_call.1} parent=0
    #allocation2 [shape = 'u8[4096]{0}', space=vmem, size = 0x1000, scoped, tag = 'input window, operand 0, single buffered']
    #allocation3 [shape = 's32[1]{0}', space=sflag, size = 0x4, scoped, tag = 'scoped memory for tpu_custom_call.1']
    #allocation4 [shape = 's32[1]{0}', space=sflag, size = 0x4, scoped, tag = 'scoped memory for tpu_custom_call.1']
    #allocation5 [shape = 'u8[4096]{0}', space=vmem, size = 0x1000, scoped, tag = 'input window, operand 1, single buffered']
    #allocation6 [shape = 's32[1]{0}', space=sflag, size = 0x4, scoped, tag = 'scoped memory for tpu_custom_call.1']
    #allocation7 [shape = 'u8[4096]{0}', space=vmem, size = 0x1000, scoped, tag = 'input window, operand 2, single buffered']
    #allocation8 [shape = 'u8[16384]{0}', space=vmem, size = 0x4000, scoped, tag = 'input window, operand 3, single buffered']
    #allocation9 [shape = 's32[1]{0}', space=sflag, size = 0x4, scoped, tag = 'scoped memory for tpu_custom_call.1']
    #allocation10 [shape = 'u8[8192]{0}', space=vmem, size = 0x2000, scoped, tag = 'input window, operand 4, single buffered']
    #allocation11 [shape = 'u8[16384]{0}', space=vmem, size = 0x4000, scoped, tag = 'input window, operand 5, single buffered']
    #allocation12 [shape = 's32[1]{0}', space=sflag, size = 0x4, scoped, tag = 'scoped memory for tpu_custom_call.1']
    #allocation13 [shape = 'u8[4096]{0}', space=vmem, size = 0x1000, scoped, tag = 'output window, operand 0, single buffered']
    %13 = vsyncpa [#allocation3], 0
    %14 = vsyncpa [#allocation6], 0
    %15 = vsyncpa [#allocation9], 0
    %16 = vsyncpa [#allocation12], 0
    %17 = vsyncpa [#allocation4], 0
    // Predicated region
    $region2: #{tpu_custom_call.1} parent=1 // pred_check
      _
    $region3: #{tpu_custom_call.1} parent=1 // pred_check_branch
      %19 = sbr.rel (0) target = $region5
    $region4: #{tpu_custom_call.1} parent=1 // pred_region
      %s21 = ssub.s32 128, 128
      %22 = vsyncadd [#allocation3], %s21
      %s24 = sshll.u32 [#allocation2], 4
      %s25 = int_to_ptr.vmem [resolvable:$true] %s24
      %27 = dma.hbm_to_vmem [thread:$0]  %s0, 128, %s25, [#allocation3]
    $region5: #{tpu_custom_call.1} parent=1 // pred_fallthru
      _
    // Predicated region
    $region6: #{tpu_custom_call.1} parent=1 // pred_check
      _
    $region7: #{tpu_custom_call.1} parent=1 // pred_check_branch
      %29 = sbr.rel (0) target = $region9
    $region8: #{tpu_custom_call.1} parent=1 // pred_region
      %s31 = ssub.s32 128, 128
      %32 = vsyncadd [#allocation6], %s31
      %s34 = sshll.u32 [#allocation5], 4
      %s35 = int_to_ptr.vmem [resolvable:$true] %s34
      %37 = dma.hbm_to_vmem [thread:$0]  %s1, 128, %s35, [#allocation6]
    $region9: #{tpu_custom_call.1} parent=1 // pred_fallthru
      _
    // Predicated region
    $region10: #{tpu_custom_call.1} parent=1 // pred_check
      _
    $region11: #{tpu_custom_call.1} parent=1 // pred_check_branch
      %39 = sbr.rel (0) target = $region13
    $region12: #{tpu_custom_call.1} parent=1 // pred_region
      %s41 = ssub.s32 128, 128
      %42 = vsyncadd [#allocation6], %s41
      %s44 = sshll.u32 [#allocation7], 4
      %s45 = int_to_ptr.vmem [resolvable:$true] %s44
      %47 = dma.hbm_to_vmem [thread:$0]  %s2, 128, %s45, [#allocation6]
    $region13: #{tpu_custom_call.1} parent=1 // pred_fallthru
      _
    // Predicated region
    $region14: #{tpu_custom_call.1} parent=1 // pred_check
      _
    $region15: #{tpu_custom_call.1} parent=1 // pred_check_branch
      %49 = sbr.rel (0) target = $region17
    $region16: #{tpu_custom_call.1} parent=1 // pred_region
      %s51 = ssub.s32 512, 512
      %52 = vsyncadd [#allocation9], %s51
      %s53 = sshll.u32 [#allocation8], 4
      %s54 = int_to_ptr.vmem [resolvable:$true] %s53
      %59 = dma.hbm_to_vmem [thread:$0]  %s3, 512, %s54, [#allocation9], 128, 128, 8
    $region17: #{tpu_custom_call.1} parent=1 // pred_fallthru
      _
    // Predicated region
    $region18: #{tpu_custom_call.1} parent=1 // pred_check
      _
    $region19: #{tpu_custom_call.1} parent=1 // pred_check_branch
      %61 = sbr.rel (0) target = $region21
    $region20: #{tpu_custom_call.1} parent=1 // pred_region
      %s63 = ssub.s32 256, 256
      %64 = vsyncadd [#allocation9], %s63
      %s65 = sshll.u32 [#allocation10], 4
      %s66 = int_to_ptr.vmem [resolvable:$true] %s65
      %71 = dma.hbm_to_vmem [thread:$0]  %s4, 256, %s66, [#allocation9], 128, 128, 8
    $region21: #{tpu_custom_call.1} parent=1 // pred_fallthru
      _
    // Predicated region
    $region22: #{tpu_custom_call.1} parent=1 // pred_check
      _
    $region23: #{tpu_custom_call.1} parent=1 // pred_check_branch
      %73 = sbr.rel (0) target = $region25
    $region24: #{tpu_custom_call.1} parent=1 // pred_region
      %s75 = ssub.s32 512, 512
      %76 = vsyncadd [#allocation12], %s75
      %s77 = sshll.u32 [#allocation11], 4
      %s78 = int_to_ptr.vmem [resolvable:$true] %s77
      %83 = dma.hbm_to_vmem [thread:$0]  %s5, 512, %s78, [#allocation12], 128, 128, 8
    $region25: #{tpu_custom_call.1} parent=1 // pred_fallthru
      _
    // Predicated region
    $region26: #{tpu_custom_call.1} parent=1 // pred_check
      _
    $region27: #{tpu_custom_call.1} parent=1 // pred_check_branch
      %85 = sbr.rel (0) target = $region29
    $region28: #{tpu_custom_call.1} parent=1 // pred_region
      _
    $region29: #{tpu_custom_call.1} parent=1 // pred_fallthru
      _
    // Predicated region
    $region30: #{tpu_custom_call.1} parent=1 // pred_check
      _
    $region31: #{tpu_custom_call.1} parent=1 // pred_check_branch
      %87 = sbr.rel (0) target = $region33
    $region32: #{tpu_custom_call.1} parent=1 // pred_region
      _
    $region33: #{tpu_custom_call.1} parent=1 // pred_fallthru
      _
    // Predicated region
    $region34: #{tpu_custom_call.1} parent=1 // pred_check
      _
    $region35: #{tpu_custom_call.1} parent=1 // pred_check_branch
      %89 = sbr.rel (0) target = $region37
    $region36: #{tpu_custom_call.1} parent=1 // pred_region
      %90 = dma.done [#allocation3], 128
    $region37: #{tpu_custom_call.1} parent=1 // pred_fallthru
      _
    // Predicated region
    $region38: #{tpu_custom_call.1} parent=1 // pred_check
      _
    $region39: #{tpu_custom_call.1} parent=1 // pred_check_branch
      %92 = sbr.rel (0) target = $region41
    $region40: #{tpu_custom_call.1} parent=1 // pred_region
      %93 = dma.done [#allocation6], 128
    $region41: #{tpu_custom_call.1} parent=1 // pred_fallthru
      _
    // Predicated region
    $region42: #{tpu_custom_call.1} parent=1 // pred_check
      _
    $region43: #{tpu_custom_call.1} parent=1 // pred_check_branch
      %95 = sbr.rel (0) target = $region45
    $region44: #{tpu_custom_call.1} parent=1 // pred_region
      %96 = dma.done [#allocation6], 128
    $region45: #{tpu_custom_call.1} parent=1 // pred_fallthru
      _
    // Predicated region
    $region46: #{tpu_custom_call.1} parent=1 // pred_check
      _
    $region47: #{tpu_custom_call.1} parent=1 // pred_check_branch
      %98 = sbr.rel (0) target = $region49
    $region48: #{tpu_custom_call.1} parent=1 // pred_region
      %99 = dma.done [#allocation9], 512
    $region49: #{tpu_custom_call.1} parent=1 // pred_fallthru
      _
    // Predicated region
    $region50: #{tpu_custom_call.1} parent=1 // pred_check
      _
    $region51: #{tpu_custom_call.1} parent=1 // pred_check_branch
      %101 = sbr.rel (0) target = $region53
    $region52: #{tpu_custom_call.1} parent=1 // pred_region
      %102 = dma.done [#allocation9], 256
    $region53: #{tpu_custom_call.1} parent=1 // pred_fallthru
      _
    // Predicated region
    $region54: #{tpu_custom_call.1} parent=1 // pred_check
      _
    $region55: #{tpu_custom_call.1} parent=1 // pred_check_branch
      %104 = sbr.rel (0) target = $region57
    $region56: #{tpu_custom_call.1} parent=1 // pred_region
      %105 = dma.done [#allocation12], 512
    $region57: #{tpu_custom_call.1} parent=1 // pred_fallthru
      _
    %v106 = vld [vmem:[#allocation2] sm:$0xff]
    %v107 = vld [vmem:[#allocation7] sm:$0xff]
    %v108 = vmul.f32 %v106, %v107
    %v109 = vld [vmem:[#allocation5] sm:$0xff]
    %v110 = vld [vmem:[#allocation10] sm:$0xff]
    %v111 = vld [vmem:[#allocation10 + $0x8] sm:$0xff]
    %vm112 = vcmask 130048
    %v114 = vsel %vm112, %v109, 0
    %116 = vmatprep.subr.mxu0 0.0
    %117 = vmatpush1.msra.mxu0 %v110
    %118 = vmatprep.subr.mxu0 0.0
    %119 = vmatpush1.msra.mxu0 %v111
    %120 = vmatprep.subr.mxu0 0.0
    %121 = vmatpush1.msra.mxu0 0.0
    %122 = vmatprep.subr.mxu0 0.0
    %123 = vmatpush1.msra.mxu0 0.0
    %124 = vmatprep.subr.mxu0 0.0
    %125 = vmatpush1.msra.mxu0 0.0
    %126 = vmatprep.subr.mxu0 0.0
    %127 = vmatpush1.msra.mxu0 0.0
    %128 = vmatprep.subr.mxu0 0.0
    %129 = vmatpush1.msra.mxu0 0.0
    %130 = vmatprep.subr.mxu0 0.0
    %131 = vmatpush1.msra.mxu0 0.0
    %132 = vmatprep.subr.mxu0 0.0
    %133 = vmatpush1.msra.mxu0 0.0
    %134 = vmatprep.subr.mxu0 0.0
    %135 = vmatpush1.msra.mxu0 0.0
    %136 = vmatprep.subr.mxu0 0.0
    %137 = vmatpush1.msra.mxu0 0.0
    %138 = vmatprep.subr.mxu0 0.0
    %139 = vmatpush1.msra.mxu0 0.0
    %140 = vmatprep.subr.mxu0 0.0
    %141 = vmatpush1.msra.mxu0 0.0
    %142 = vmatprep.subr.mxu0 0.0
    %143 = vmatpush1.msra.mxu0 0.0
    %144 = vmatprep.subr.mxu0 0.0
    %145 = vmatpush1.msra.mxu0 0.0
    %146 = vmatprep.subr.mxu0 0.0
    %147 = vmatpush1.msra.mxu0 0.0
    %148 = vmatprep.subr.mxu0 0.0
    %149 = vmatpush1.msra.mxu0 0.0
    %150 = vmatprep.subr.mxu0 0.0
    %151 = vmatpush1.msra.mxu0 0.0
    %152 = vmatprep.subr.mxu0 0.0
    %153 = vmatpush1.msra.mxu0 0.0
    %154 = vmatprep.subr.mxu0 0.0
    %155 = vmatpush1.msra.mxu0 0.0
    %156 = vmatprep.subr.mxu0 0.0
    %157 = vmatpush1.msra.mxu0 0.0
    %158 = vmatprep.subr.mxu0 0.0
    %159 = vmatpush1.msra.mxu0 0.0
    %160 = vmatprep.subr.mxu0 0.0
    %161 = vmatpush1.msra.mxu0 0.0
    %162 = vmatprep.subr.mxu0 0.0
    %163 = vmatpush1.msra.mxu0 0.0
    %164 = vmatprep.subr.mxu0 0.0
    %165 = vmatpush1.msra.mxu0 0.0
    %166 = vmatprep.subr.mxu0 0.0
    %167 = vmatpush1.msra.mxu0 0.0
    %168 = vmatprep.subr.mxu0 0.0
    %169 = vmatpush1.msra.mxu0 0.0
    %170 = vmatprep.subr.mxu0 0.0
    %171 = vmatpush1.msra.mxu0 0.0
    %172 = vmatprep.subr.mxu0 0.0
    %173 = vmatpush1.msra.mxu0 0.0
    %174 = vmatprep.subr.mxu0 0.0
    %175 = vmatpush1.msra.mxu0 0.0
    %176 = vmatprep.subr.mxu0 0.0
    %177 = vmatpush1.msra.mxu0 0.0
    %178 = vmatprep.subr.mxu0 0.0
    %179 = vmatpush1.msra.mxu0 0.0
    %180 = vmatprep.mubr.f32.mxu0 0.0
    %181 = vmatmul.mubr.f32.gmra.mrb[0].mxu0 %v114
    %v182 = vpop.f32.mrb[0].mxu0
    %v183 = vadd.f32 0.0, %v182
    %v184 = vpop.f32.mrb[0].mxu0
    %185 = vdwg.mxu0
    %v186 = vld [vmem:[#allocation8] sm:$0xff]
    %v187 = vld [vmem:[#allocation8 + $0x8] sm:$0xff]
    %v188 = vld [vmem:[#allocation8 + $0x10] sm:$0xff]
    %v189 = vld [vmem:[#allocation8 + $0x18] sm:$0xff]
    %vm190 = vcmask 261120
    %v192 = vsel %vm190, %v108, 0
    %194 = vmatprep.subr.mxu0 0.0
    %195 = vmatpush1.msra.mxu0 %v186
    %196 = vmatprep.subr.mxu0 0.0
    %197 = vmatpush1.msra.mxu0 %v187
    %198 = vmatprep.subr.mxu0 0.0
    %199 = vmatpush1.msra.mxu0 %v188
    %200 = vmatprep.subr.mxu0 0.0
    %201 = vmatpush1.msra.mxu0 %v189
    %202 = vmatprep.subr.mxu0 0.0
    %203 = vmatpush1.msra.mxu0 0.0
    %204 = vmatprep.subr.mxu0 0.0
    %205 = vmatpush1.msra.mxu0 0.0
    %206 = vmatprep.subr.mxu0 0.0
    %207 = vmatpush1.msra.mxu0 0.0
    %208 = vmatprep.subr.mxu0 0.0
    %209 = vmatpush1.msra.mxu0 0.0
    %210 = vmatprep.subr.mxu0 0.0
    %211 = vmatpush1.msra.mxu0 0.0
    %212 = vmatprep.subr.mxu0 0.0
    %213 = vmatpush1.msra.mxu0 0.0
    %214 = vmatprep.subr.mxu0 0.0
    %215 = vmatpush1.msra.mxu0 0.0
    %216 = vmatprep.subr.mxu0 0.0
    %217 = vmatpush1.msra.mxu0 0.0
    %218 = vmatprep.subr.mxu0 0.0
    %219 = vmatpush1.msra.mxu0 0.0
    %220 = vmatprep.subr.mxu0 0.0
    %221 = vmatpush1.msra.mxu0 0.0
    %222 = vmatprep.subr.mxu0 0.0
    %223 = vmatpush1.msra.mxu0 0.0
    %224 = vmatprep.subr.mxu0 0.0
    %225 = vmatpush1.msra.mxu0 0.0
    %226 = vmatprep.subr.mxu0 0.0
    %227 = vmatpush1.msra.mxu0 0.0
    %228 = vmatprep.subr.mxu0 0.0
    %229 = vmatpush1.msra.mxu0 0.0
    %230 = vmatprep.subr.mxu0 0.0
    %231 = vmatpush1.msra.mxu0 0.0
    %232 = vmatprep.subr.mxu0 0.0
    %233 = vmatpush1.msra.mxu0 0.0
    %234 = vmatprep.subr.mxu0 0.0
    %235 = vmatpush1.msra.mxu0 0.0
    %236 = vmatprep.subr.mxu0 0.0
    %237 = vmatpush1.msra.mxu0 0.0
    %238 = vmatprep.subr.mxu0 0.0
    %239 = vmatpush1.msra.mxu0 0.0
    %240 = vmatprep.subr.mxu0 0.0
    %241 = vmatpush1.msra.mxu0 0.0
    %242 = vmatprep.subr.mxu0 0.0
    %243 = vmatpush1.msra.mxu0 0.0
    %244 = vmatprep.subr.mxu0 0.0
    %245 = vmatpush1.msra.mxu0 0.0
    %246 = vmatprep.subr.mxu0 0.0
    %247 = vmatpush1.msra.mxu0 0.0
    %248 = vmatprep.subr.mxu0 0.0
    %249 = vmatpush1.msra.mxu0 0.0
    %250 = vmatprep.subr.mxu0 0.0
    %251 = vmatpush1.msra.mxu0 0.0
    %252 = vmatprep.subr.mxu0 0.0
    %253 = vmatpush1.msra.mxu0 0.0
    %254 = vmatprep.subr.mxu0 0.0
    %255 = vmatpush1.msra.mxu0 0.0
    %256 = vmatprep.subr.mxu0 0.0
    %257 = vmatpush1.msra.mxu0 0.0
    %258 = vmatprep.mubr.f32.mxu0 0.0
    %259 = vmatmul.mubr.f32.gmra.mrb[0].mxu0 %v192
    %v260 = vpop.f32.mrb[0].mxu0
    %v261 = vadd.f32 %v183, %v260
    %v262 = vpop.f32.mrb[0].mxu0
    %263 = vdwg.mxu0
    %v264 = vld [vmem:[%s6] sm:$0x1]
    %v266 = vlaneseq
    %v267 = vshrl.u32 %v266, 7
    %v268 = vsub.s32 0, %v267
    %v269 = vrot.slane %v264, %v268
    %v271 = vadd.f32 %v261, %v269
    %v272 = vxor.u32 %v271, 2147483648
    %v273 = vmul.f32 %v272, 1.442695
    %v274 = vpow.pop %v273
    %v275 = vadd.f32 %v274, 1.0
    %v276 = vrcp.pop %v275
    %v277 = vmul.f32 1.0, %v276
    %278 = vrot.lane.b32.xlu0 %v108, 32
    %v279 = vpop.permute.xlu0 %278
    %v281 = vmul.f32 %v277, %v279
    %v282 = vld [vmem:[#allocation11] sm:$0xff]
    %v283 = vld [vmem:[#allocation11 + $0x8] sm:$0xff]
    %v284 = vld [vmem:[#allocation11 + $0x10] sm:$0xff]
    %v285 = vld [vmem:[#allocation11 + $0x18] sm:$0xff]
    %287 = vrot.lane.b32.xlu0 %v281, 96
    %v288 = vpop.permute.xlu0 %287
    %290 = vrot.lane.b32.xlu0 %v183, 64
    %v291 = vpop.permute.xlu0 %290
    %v293 = vsel %vm190, %v288, 0
    %295 = vmatprep.subr.mxu0 0.0
    %296 = vmatpush1.msra.mxu0 %v282
    %297 = vmatprep.subr.mxu0 0.0
    %298 = vmatpush1.msra.mxu0 %v283
    %299 = vmatprep.subr.mxu0 0.0
    %300 = vmatpush1.msra.mxu0 %v284
    %301 = vmatprep.subr.mxu0 0.0
    %302 = vmatpush1.msra.mxu0 %v285
    %303 = vmatprep.subr.mxu0 0.0
    %304 = vmatpush1.msra.mxu0 0.0
    %305 = vmatprep.subr.mxu0 0.0
    %306 = vmatpush1.msra.mxu0 0.0
    %307 = vmatprep.subr.mxu0 0.0
    %308 = vmatpush1.msra.mxu0 0.0
    %309 = vmatprep.subr.mxu0 0.0
    %310 = vmatpush1.msra.mxu0 0.0
    %311 = vmatprep.subr.mxu0 0.0
    %312 = vmatpush1.msra.mxu0 0.0
    %313 = vmatprep.subr.mxu0 0.0
    %314 = vmatpush1.msra.mxu0 0.0
    %315 = vmatprep.subr.mxu0 0.0
    %316 = vmatpush1.msra.mxu0 0.0
    %317 = vmatprep.subr.mxu0 0.0
    %318 = vmatpush1.msra.mxu0 0.0
    %319 = vmatprep.subr.mxu0 0.0
    %320 = vmatpush1.msra.mxu0 0.0
    %321 = vmatprep.subr.mxu0 0.0
    %322 = vmatpush1.msra.mxu0 0.0
    %323 = vmatprep.subr.mxu0 0.0
    %324 = vmatpush1.msra.mxu0 0.0
    %325 = vmatprep.subr.mxu0 0.0
    %326 = vmatpush1.msra.mxu0 0.0
    %327 = vmatprep.subr.mxu0 0.0
    %328 = vmatpush1.msra.mxu0 0.0
    %329 = vmatprep.subr.mxu0 0.0
    %330 = vmatpush1.msra.mxu0 0.0
    %331 = vmatprep.subr.mxu0 0.0
    %332 = vmatpush1.msra.mxu0 0.0
    %333 = vmatprep.subr.mxu0 0.0
    %334 = vmatpush1.msra.mxu0 0.0
    %335 = vmatprep.subr.mxu0 0.0
    %336 = vmatpush1.msra.mxu0 0.0
    %337 = vmatprep.subr.mxu0 0.0
    %338 = vmatpush1.msra.mxu0 0.0
    %339 = vmatprep.subr.mxu0 0.0
    %340 = vmatpush1.msra.mxu0 0.0
    %341 = vmatprep.subr.mxu0 0.0
    %342 = vmatpush1.msra.mxu0 0.0
    %343 = vmatprep.subr.mxu0 0.0
    %344 = vmatpush1.msra.mxu0 0.0
    %345 = vmatprep.subr.mxu0 0.0
    %346 = vmatpush1.msra.mxu0 0.0
    %347 = vmatprep.subr.mxu0 0.0
    %348 = vmatpush1.msra.mxu0 0.0
    %349 = vmatprep.subr.mxu0 0.0
    %350 = vmatpush1.msra.mxu0 0.0
    %351 = vmatprep.subr.mxu0 0.0
    %352 = vmatpush1.msra.mxu0 0.0
    %353 = vmatprep.subr.mxu0 0.0
    %354 = vmatpush1.msra.mxu0 0.0
    %355 = vmatprep.subr.mxu0 0.0
    %356 = vmatpush1.msra.mxu0 0.0
    %357 = vmatprep.subr.mxu0 0.0
    %358 = vmatpush1.msra.mxu0 0.0
    %359 = vmatprep.mubr.f32.mxu0 0.0
    %360 = vmatmul.mubr.f32.gmra.mrb[0].mxu0 %v293
    %v361 = vpop.f32.mrb[0].mxu0
    %v362 = vadd.f32 %v291, %v361
    %v363 = vpop.f32.mrb[0].mxu0
    %364 = vdwg.mxu0
    %v365 = vld [vmem:[%s7] sm:$0x1]
    %v367 = vlaneseq
    %v368 = vshrl.u32 %v367, 7
    %v369 = vsub.s32 0, %v368
    %v370 = vrot.slane %v365, %v369
    %v372 = vadd.f32 %v362, %v370
    %v373 = vtanh.pop %v372
    %v374 = vsub.f32 %v373, %v108
    %v375 = vmul.f32 %v277, %v374
    %v376 = vadd.f32 %v108, %v375
    %377 = vst.msk [vmem:[#allocation13] sm:$0xff] %vm190, %v376
    // Predicated region
    $region58: #{tpu_custom_call.1} parent=1 // pred_check
      _
    $region59: #{tpu_custom_call.1} parent=1 // pred_check_branch
      %379 = sbr.rel (0) target = $region61
    $region60: #{tpu_custom_call.1} parent=1 // pred_region
      %s381 = ssub.s32 128, 128
      %382 = vsyncadd [#allocation4], %s381
      %s384 = sshll.u32 [#allocation13], 4
      %s385 = int_to_ptr.vmem [resolvable:$true] %s384
      %387 = dma.vmem_to_hbm [thread:$0]  %s385, 128, %s8, [#allocation4]
    $region61: #{tpu_custom_call.1} parent=1 // pred_fallthru
      _
    // Predicated region
    $region62: #{tpu_custom_call.1} parent=1 // pred_check
      _
    $region63: #{tpu_custom_call.1} parent=1 // pred_check_branch
      %389 = sbr.rel (0) target = $region65
    $region64: #{tpu_custom_call.1} parent=1 // pred_region
      %390 = dma.done [#allocation4], 128
    $region65: #{tpu_custom_call.1} parent=1 // pred_fallthru
      _
    %391 = vsyncpa [#allocation3], 1
    %392 = vsyncpa [#allocation6], 1
    %393 = vsyncpa [#allocation9], 1
    %394 = vsyncpa [#allocation12], 1
    %395 = vsyncpa [#allocation4], 1

</llo_original>
